<compile_context>
chip_gen: v7x
topology: tpu7x:2x2x1
jax: 0.10.0
libtpu: 0.0.40
codegen_flags: <defaults>
</compile_context>

<pallas_src>
import functools
import numpy as np
import jax
import jax.numpy as jnp
from jax.experimental import pallas as pl
from jax.experimental.pallas import tpu as pltpu

BN_EPS = 1e-5


def _round_up(v, m):
    return ((v + m - 1) // m) * m


def _pack_rows(blocks, width, dtype, row_align=16):
    """Stack 2-D blocks vertically into one [rows, width] zero-padded slab.

    Each block starts at a row offset aligned to `row_align` so that the
    static in-kernel slices stay sublane-tile aligned (free).  Returns
    (slab, tuple_of_row_offsets).
    """
    parts, offsets, r = [], [], 0
    for b in blocks:
        h, w = b.shape
        offsets.append(r)
        hp = _round_up(h, row_align)
        parts.append(jnp.pad(b.astype(dtype), ((0, hp - h), (0, width - w))))
        r += hp
    return jnp.concatenate(parts, axis=0), tuple(offsets)


def _sector_gnn_kernel(dims, woffs, boffs, reassoc,
                       a_ref, x_ref, w_ref, bias_ref, out_ref):
    N, F, H, h2, S, out_w = dims
    o_wg0, o_wg1, o_wfc1, o_wfc2, o_pool, o_w1, o_w2 = woffs
    o_b0, o_b1, o_bfc1, o_hb1, o_pembb, o_hb2 = boffs
    f32, bf16 = jnp.float32, jnp.bfloat16

    # ---- operands (bf16 for the MXU; biases / accumulation stay f32) --------
    a = a_ref[...].astype(bf16)                            # [N, N]
    x = x_ref[...].astype(bf16)                            # [N, F]

    wg0 = w_ref[o_wg0:o_wg0 + F, 0:H]                      # BN folded
    wg1 = w_ref[o_wg1:o_wg1 + H, 0:H]
    wfc1 = w_ref[o_wfc1:o_wfc1 + H, 0:h2]
    wfc2 = w_ref[o_wfc2:o_wfc2 + h2, 0:H]
    pool = w_ref[o_pool:o_pool + S, 0:N]
    w1cat = w_ref[o_w1:o_w1 + H, 0:S * h2]                 # concat of head W1
    w2stk = w_ref[o_w2:o_w2 + S * h2, 0:out_w]             # vstack of head W2

    b0 = bias_ref[o_b0:o_b0 + 1, 0:H]
    b1 = bias_ref[o_b1:o_b1 + 1, 0:H]
    bfc1 = bias_ref[o_bfc1:o_bfc1 + 1, 0:h2]
    hb1 = bias_ref[o_hb1:o_hb1 + 1, 0:S * h2]
    pemb_b = bias_ref[o_pembb:o_pembb + S, 0:H]            # rowsum * bfc2
    hb2 = bias_ref[o_hb2:o_hb2 + S, 0:out_w]

    # ---- GCN layer 0 (BN folded), contraction over min(F, H) ----------------
    if reassoc:   # F < H: (A @ X) @ W0
        t = jnp.dot(a, x, preferred_element_type=f32).astype(bf16)
        h = jnp.dot(t, wg0, preferred_element_type=f32) + b0
    else:         # H <= F: A @ (X @ W0)
        t = jnp.dot(x, wg0, preferred_element_type=f32).astype(bf16)
        h = jnp.dot(a, t, preferred_element_type=f32) + b0
    h = jnp.maximum(h, 0.0)                                # dropout: identity (eval)

    # ---- GCN layer 1 (BN folded) --------------------------------------------
    t = jnp.dot(h.astype(bf16), wg1, preferred_element_type=f32).astype(bf16)
    h = jnp.maximum(jnp.dot(a, t, preferred_element_type=f32) + b1, 0.0)

    # ---- StockGNN fc1 + ReLU -------------------------------------------------
    h = jnp.maximum(
        jnp.dot(h.astype(bf16), wfc1, preferred_element_type=f32) + bfc1, 0.0)

    # ---- sector-mean pool BEFORE fc2 (S rows, bfc2 term prefolded) ----------
    ph = jnp.dot(pool, h.astype(bf16), preferred_element_type=f32)         # [S, h2]
    pemb = (jnp.dot(ph.astype(bf16), wfc2, preferred_element_type=f32)
            + pemb_b)                                                      # [S, H]

    # ---- per-sector heads: O(S) masked batched form (no reshape/flatten) ----
    hh = jnp.dot(pemb.astype(bf16), w1cat, preferred_element_type=f32) + hb1
    hh = jnp.maximum(hh, 0.0)                                              # [S, S*h2]
    rows = jax.lax.broadcasted_iota(jnp.int32, (S, S * h2), 0)
    cols = jax.lax.broadcasted_iota(jnp.int32, (S, S * h2), 1)
    lo = rows * h2
    hh = jnp.where((cols >= lo) & (cols < lo + h2), hh, 0.0)               # keep diag blocks
    out_ref[...] = (jnp.dot(hh.astype(bf16), w2stk,
                            preferred_element_type=f32) + hb2)             # [S, out_w]


def make_sector_gnn(params, pool):
    """One-time prep: fold BN, repack heads, build slabs; return jitted fwd."""
    F, H = params["wg0"].shape
    h2 = params["wfc1"].shape[1]
    S, N = pool.shape
    O = params["hb2"].shape[-1]
    out_w = max(128, _round_up(S * O, 128))          # lane-dense output store

    # ---- fold eval-mode BatchNorm + GCN bias into the GCN weights/biases ----
    s0 = params["g0"] * jax.lax.rsqrt(params["v0"] + BN_EPS)
    wg0 = params["wg0"] * s0
    b0 = (params["bg0"] - params["m0"]) * s0 + params["be0"]
    s1 = params["g1"] * jax.lax.rsqrt(params["v1"] + BN_EPS)
    wg1 = params["wg1"] * s1
    b1 = (params["bg1"] - params["m1"]) * s1 + params["be1"]

    # ---- heads as O(S) concatenated weights (no S^2 block-diagonal) ---------
    w1cat = jnp.concatenate([params["hw1"][s] for s in range(S)], axis=1)  # [H, S*h2]
    w2stk = jnp.concatenate([params["hw2"][s] for s in range(S)], axis=0)  # [S*h2, O]
    hb1_flat = params["hb1"].reshape(1, S * h2)
    hb2 = params["hb2"]                                                    # [S, O]

    # pool-before-fc2 rewrite: bfc2 term prefolded with the pool row-sum (f32)
    rowsum = jnp.sum(pool, axis=1, keepdims=True)                          # [S, 1]
    pemb_bias = rowsum * params["bfc2"]                                    # [S, H]

    # ---- pack all params into ONE bf16 weight slab + ONE f32 bias slab ------
    wp_width = max(H, N, h2, S * h2, out_w)
    w_slab, woffs = _pack_rows(
        [wg0, wg1, params["wfc1"], params["wfc2"], pool, w1cat, w2stk],
        wp_width, jnp.bfloat16, row_align=16)
    b_width = max(H, h2, S * h2, out_w)
    bias_slab, boffs = _pack_rows(
        [b0, b1, params["bfc1"], hb1_flat, pemb_bias, hb2],
        b_width, jnp.float32, row_align=8)

    dims = (N, F, H, h2, S, out_w)
    reassoc = F < H
    kernel = functools.partial(_sector_gnn_kernel, dims, woffs, boffs, reassoc)

    flops = 2 * (N * N * min(F, H) + N * F * H + N * H * H + N * N * H
                 + N * H * h2 + S * N * h2 + S * h2 * H
                 + S * H * (S * h2) + S * (S * h2) * out_w)
    bytes_accessed = (N * N * 4 + N * F * 4 + w_slab.size * 2
                      + bias_slab.size * 4 + S * out_w * 4)

    vmem = pl.BlockSpec(memory_space=pltpu.MemorySpace.VMEM)
    pcall = pl.pallas_call(
        kernel,
        out_shape=jax.ShapeDtypeStruct((S, out_w), jnp.float32),
        in_specs=[vmem, vmem, vmem, vmem],
        out_specs=vmem,
        cost_estimate=pl.CostEstimate(flops=flops, transcendentals=0,
                                      bytes_accessed=bytes_accessed),
    )

    @jax.jit
    def forward(a_hat, x):
        # No per-call param prep: slabs are captured constants; a_hat/x go
        # straight to the kernel (bf16 cast happens in-kernel).
        out = pcall(a_hat, x, w_slab, bias_slab)
        return out[:, :O]                                                  # [S, O]

    return forward


# ----------------------------- glue / setup ----------------------------------
def build_normalized_adjacency(edge_index, num_nodes):
    """A_hat = D^{-1/2} (sym(A) + I) D^{-1/2}  (symmetric GCN normalization)."""
    src, dst = edge_index
    a = jnp.zeros((num_nodes, num_nodes), jnp.float32)
    a = a.at[src, dst].set(1.0)
    a = jnp.maximum(a, a.T)                        # symmetrize (binary adjacency)
    a = a + jnp.eye(num_nodes, dtype=jnp.float32)  # self loops
    deg = jnp.sum(a, axis=1)
    d_inv_sqrt = jnp.where(deg > 0, 1.0 / jnp.sqrt(deg), 0.0)
    return a * d_inv_sqrt[:, None] * d_inv_sqrt[None, :]


def build_sector_pool(sectors, num_sectors, num_nodes):
    """Row-normalized one-hot [S, N] so that pool @ emb = per-sector mean."""
    onehot = (sectors[None, :] == jnp.arange(num_sectors)[:, None]).astype(jnp.float32)
    counts = jnp.maximum(jnp.sum(onehot, axis=1, keepdims=True), 1.0)
    return onehot / counts


def init_params(key, input_dim, hidden_dim, output_dim, num_sectors):
    """Deterministic synthetic parameters (PyTorch-like uniform fan-in init)."""
    h2 = hidden_dim // 2
    keys = jax.random.split(key, 16)

    def lin(k, fan_in, shape):
        bound = 1.0 / np.sqrt(fan_in)
        return jax.random.uniform(k, shape, jnp.float32, -bound, bound)

    return {
        # GCN layer 0
        "wg0": lin(keys[0], input_dim, (input_dim, hidden_dim)),
        "bg0": lin(keys[1], input_dim, (1, hidden_dim)),
        "g0": jnp.ones((1, hidden_dim), jnp.float32),
        "be0": jnp.zeros((1, hidden_dim), jnp.float32),
        "m0": jnp.zeros((1, hidden_dim), jnp.float32),
        "v0": jnp.ones((1, hidden_dim), jnp.float32),
        # GCN layer 1
        "wg1": lin(keys[2], hidden_dim, (hidden_dim, hidden_dim)),
        "bg1": lin(keys[3], hidden_dim, (1, hidden_dim)),
        "g1": jnp.ones((1, hidden_dim), jnp.float32),
        "be1": jnp.zeros((1, hidden_dim), jnp.float32),
        "m1": jnp.zeros((1, hidden_dim), jnp.float32),
        "v1": jnp.ones((1, hidden_dim), jnp.float32),
        # StockGNN fc1 / fc2 (fc2 output = hidden_dim, per SectorStockGNN)
        "wfc1": lin(keys[4], hidden_dim, (hidden_dim, h2)),
        "bfc1": lin(keys[5], hidden_dim, (1, h2)),
        "wfc2": lin(keys[6], h2, (h2, hidden_dim)),
        "bfc2": lin(keys[7], h2, (1, hidden_dim)),
        # Per-sector heads: Linear(H, H/2) -> ReLU -> Linear(H/2, O)
        "hw1": lin(keys[8], hidden_dim, (num_sectors, hidden_dim, h2)),
        "hb1": lin(keys[9], hidden_dim, (num_sectors, h2)),
        "hw2": lin(keys[10], h2, (num_sectors, h2, output_dim)),
        "hb2": lin(keys[11], h2, (num_sectors, output_dim)),
    }


def reference_forward(a_hat, x, params, pool):
    """Pure-JAX f32 reference of the ORIGINAL (unfolded) forward pass."""
    h = a_hat @ (x @ params["wg0"]) + params["bg0"]
    h = (h - params["m0"]) / jnp.sqrt(params["v0"] + BN_EPS) * params["g0"] + params["be0"]
    h = jnp.maximum(h, 0.0)
    h = a_hat @ (h @ params["wg1"]) + params["bg1"]
    h = (h - params["m1"]) / jnp.sqrt(params["v1"] + BN_EPS) * params["g1"] + params["be1"]
    h = jnp.maximum(h, 0.0)
    h = jnp.maximum(h @ params["wfc1"] + params["bfc1"], 0.0)
    emb = h @ params["wfc2"] + params["bfc2"]
    pooled = pool @ emb
    hh = jnp.maximum(jnp.einsum("sh,shk->sk", pooled, params["hw1"]) + params["hb1"], 0.0)
    return jnp.einsum("sk,sko->so", hh, params["hw2"]) + params["hb2"]


if __name__ == "__main__":
    # Small module-consistent shapes: N nodes, F input features, H hidden,
    # S sectors, O output per sector.
    N, F, H, O, S = 32, 16, 32, 1, 4

    key = jax.random.PRNGKey(0)
    k_x, k_e, k_p = jax.random.split(key, 3)

    x = jax.random.normal(k_x, (N, F), jnp.float32)
    num_edges = 64
    edge_index = jax.random.randint(k_e, (2, num_edges), 0, N)           # [2, E]
    sectors = jnp.arange(N, dtype=jnp.int32) % S                          # sector id per node

    a_hat = build_normalized_adjacency(edge_index, N)                     # [N, N]
    pool = build_sector_pool(sectors, S, N)                               # [S, N]
    params = init_params(k_p, F, H, O, S)

    # One-time prep (per param / sector-assignment update), then cheap calls.
    forward = make_sector_gnn(params, pool)

    out = forward(a_hat, x)                                               # [S, O]
    out = jax.block_until_ready(out)

    ref = reference_forward(a_hat, x, params, pool)
    # bf16 MXU operands with f32 accumulation -> looser tolerance than pure f32.
    np.testing.assert_allclose(np.asarray(out), np.asarray(ref), atol=3e-2, rtol=3e-2)

    print("KERNEL_OK")
</pallas_src>

<mosaic_0001>
module attributes {stable_mosaic.version = 11 : i64} {
  func.func @_sector_gnn_kernel(%arg0: memref<32x32xf32, #tpu.memory_space<vmem>>, %arg1: memref<32x16xf32, #tpu.memory_space<vmem>>, %arg2: memref<208x128xbf16, #tpu.memory_space<vmem>>, %arg3: memref<48x128xf32, #tpu.memory_space<vmem>>, %arg4: memref<4x128xf32, #tpu.memory_space<vmem>>) attributes {dimension_semantics = [], scalar_prefetch = 0 : i64, scratch_operands = 0 : i64, tpu.core_type = #tpu.core_type<tc>} {
    %c0 = arith.constant 0 : index
    %c0_0 = arith.constant 0 : index
    %0 = vector.load %arg0[%c0, %c0_0] : memref<32x32xf32, #tpu.memory_space<vmem>>, vector<32x32xf32>
    %1 = arith.truncf %0 : vector<32x32xf32> to vector<32x32xbf16>
    %c0_1 = arith.constant 0 : index
    %c0_2 = arith.constant 0 : index
    %2 = vector.load %arg1[%c0_1, %c0_2] : memref<32x16xf32, #tpu.memory_space<vmem>>, vector<32x16xf32>
    %3 = arith.truncf %2 : vector<32x16xf32> to vector<32x16xbf16>
    %c0_3 = arith.constant 0 : index
    %c0_4 = arith.constant 0 : index
    %4 = vector.load %arg2[%c0_3, %c0_4] : memref<208x128xbf16, #tpu.memory_space<vmem>>, vector<16x32xbf16>
    %c16 = arith.constant 16 : index
    %c0_5 = arith.constant 0 : index
    %5 = vector.load %arg2[%c16, %c0_5] : memref<208x128xbf16, #tpu.memory_space<vmem>>, vector<32x32xbf16>
    %c48 = arith.constant 48 : index
    %c0_6 = arith.constant 0 : index
    %6 = vector.load %arg2[%c48, %c0_6] : memref<208x128xbf16, #tpu.memory_space<vmem>>, vector<32x16xbf16>
    %c80 = arith.constant 80 : index
    %c0_7 = arith.constant 0 : index
    %7 = vector.load %arg2[%c80, %c0_7] : memref<208x128xbf16, #tpu.memory_space<vmem>>, vector<16x32xbf16>
    %c96 = arith.constant 96 : index
    %c0_8 = arith.constant 0 : index
    %8 = vector.load %arg2[%c96, %c0_8] : memref<208x128xbf16, #tpu.memory_space<vmem>>, vector<4x32xbf16>
    %c112 = arith.constant 112 : index
    %c0_9 = arith.constant 0 : index
    %9 = vector.load %arg2[%c112, %c0_9] : memref<208x128xbf16, #tpu.memory_space<vmem>>, vector<32x64xbf16>
    %c144 = arith.constant 144 : index
    %c0_10 = arith.constant 0 : index
    %10 = vector.load %arg2[%c144, %c0_10] : memref<208x128xbf16, #tpu.memory_space<vmem>>, vector<64x128xbf16>
    %c0_11 = arith.constant 0 : index
    %c0_12 = arith.constant 0 : index
    %11 = vector.load %arg3[%c0_11, %c0_12] : memref<48x128xf32, #tpu.memory_space<vmem>>, vector<1x32xf32>
    %c8 = arith.constant 8 : index
    %c0_13 = arith.constant 0 : index
    %12 = vector.load %arg3[%c8, %c0_13] : memref<48x128xf32, #tpu.memory_space<vmem>>, vector<1x32xf32>
    %c16_14 = arith.constant 16 : index
    %c0_15 = arith.constant 0 : index
    %13 = vector.load %arg3[%c16_14, %c0_15] : memref<48x128xf32, #tpu.memory_space<vmem>>, vector<1x16xf32>
    %c24 = arith.constant 24 : index
    %c0_16 = arith.constant 0 : index
    %14 = vector.load %arg3[%c24, %c0_16] : memref<48x128xf32, #tpu.memory_space<vmem>>, vector<1x64xf32>
    %c32 = arith.constant 32 : index
    %c0_17 = arith.constant 0 : index
    %15 = vector.load %arg3[%c32, %c0_17] : memref<48x128xf32, #tpu.memory_space<vmem>>, vector<4x32xf32>
    %c40 = arith.constant 40 : index
    %c0_18 = arith.constant 0 : index
    %16 = vector.load %arg3[%c40, %c0_18] : memref<48x128xf32, #tpu.memory_space<vmem>>, vector<4x128xf32>
    %cst = arith.constant dense<0.000000e+00> : vector<32x16xf32>
    %17 = tpu.matmul %1, %3, %cst {dimension_numbers = #tpu.dot_dimension_numbers<[1], [0], [0], [1], [0, 0, 1, 1], [], []>} : vector<32x32xbf16>, vector<32x16xbf16>, vector<32x16xf32> -> vector<32x16xf32>
    %18 = arith.truncf %17 : vector<32x16xf32> to vector<32x16xbf16>
    %cst_19 = arith.constant dense<0.000000e+00> : vector<32x32xf32>
    %19 = tpu.matmul %18, %4, %cst_19 {dimension_numbers = #tpu.dot_dimension_numbers<[1], [0], [0], [1], [0, 0, 1, 1], [], []>} : vector<32x16xbf16>, vector<16x32xbf16>, vector<32x32xf32> -> vector<32x32xf32>
    %20 = vector.broadcast %11 : vector<1x32xf32> to vector<32x32xf32>
    %21 = arith.addf %19, %20 : vector<32x32xf32>
    %cst_20 = arith.constant 0.000000e+00 : f32
    %22 = vector.broadcast %cst_20 : f32 to vector<32x32xf32>
    %23 = arith.maximumf %21, %22 : vector<32x32xf32>
    %24 = arith.truncf %23 : vector<32x32xf32> to vector<32x32xbf16>
    %cst_21 = arith.constant dense<0.000000e+00> : vector<32x32xf32>
    %25 = tpu.matmul %24, %5, %cst_21 {dimension_numbers = #tpu.dot_dimension_numbers<[1], [0], [0], [1], [0, 0, 1, 1], [], []>} : vector<32x32xbf16>, vector<32x32xbf16>, vector<32x32xf32> -> vector<32x32xf32>
    %26 = arith.truncf %25 : vector<32x32xf32> to vector<32x32xbf16>
    %cst_22 = arith.constant dense<0.000000e+00> : vector<32x32xf32>
    %27 = tpu.matmul %1, %26, %cst_22 {dimension_numbers = #tpu.dot_dimension_numbers<[1], [0], [0], [1], [0, 0, 1, 1], [], []>} : vector<32x32xbf16>, vector<32x32xbf16>, vector<32x32xf32> -> vector<32x32xf32>
    %28 = vector.broadcast %12 : vector<1x32xf32> to vector<32x32xf32>
    %29 = arith.addf %27, %28 : vector<32x32xf32>
    %cst_23 = arith.constant 0.000000e+00 : f32
    %30 = vector.broadcast %cst_23 : f32 to vector<32x32xf32>
    %31 = arith.maximumf %29, %30 : vector<32x32xf32>
    %32 = arith.truncf %31 : vector<32x32xf32> to vector<32x32xbf16>
    %cst_24 = arith.constant dense<0.000000e+00> : vector<32x16xf32>
    %33 = tpu.matmul %32, %6, %cst_24 {dimension_numbers = #tpu.dot_dimension_numbers<[1], [0], [0], [1], [0, 0, 1, 1], [], []>} : vector<32x32xbf16>, vector<32x16xbf16>, vector<32x16xf32> -> vector<32x16xf32>
    %34 = vector.broadcast %13 : vector<1x16xf32> to vector<32x16xf32>
    %35 = arith.addf %33, %34 : vector<32x16xf32>
    %cst_25 = arith.constant 0.000000e+00 : f32
    %36 = vector.broadcast %cst_25 : f32 to vector<32x16xf32>
    %37 = arith.maximumf %35, %36 : vector<32x16xf32>
    %38 = arith.truncf %37 : vector<32x16xf32> to vector<32x16xbf16>
    %cst_26 = arith.constant dense<0.000000e+00> : vector<4x16xf32>
    %39 = tpu.matmul %8, %38, %cst_26 {dimension_numbers = #tpu.dot_dimension_numbers<[1], [0], [0], [1], [0, 0, 1, 1], [], []>} : vector<4x32xbf16>, vector<32x16xbf16>, vector<4x16xf32> -> vector<4x16xf32>
    %40 = arith.truncf %39 : vector<4x16xf32> to vector<4x16xbf16>
    %cst_27 = arith.constant dense<0.000000e+00> : vector<4x32xf32>
    %41 = tpu.matmul %40, %7, %cst_27 {dimension_numbers = #tpu.dot_dimension_numbers<[1], [0], [0], [1], [0, 0, 1, 1], [], []>} : vector<4x16xbf16>, vector<16x32xbf16>, vector<4x32xf32> -> vector<4x32xf32>
    %42 = arith.addf %41, %15 : vector<4x32xf32>
    %43 = arith.truncf %42 : vector<4x32xf32> to vector<4x32xbf16>
    %cst_28 = arith.constant dense<0.000000e+00> : vector<4x64xf32>
    %44 = tpu.matmul %43, %9, %cst_28 {dimension_numbers = #tpu.dot_dimension_numbers<[1], [0], [0], [1], [0, 0, 1, 1], [], []>} : vector<4x32xbf16>, vector<32x64xbf16>, vector<4x64xf32> -> vector<4x64xf32>
    %45 = vector.broadcast %14 : vector<1x64xf32> to vector<4x64xf32>
    %46 = arith.addf %44, %45 : vector<4x64xf32>
    %cst_29 = arith.constant 0.000000e+00 : f32
    %47 = vector.broadcast %cst_29 : f32 to vector<4x64xf32>
    %48 = arith.maximumf %46, %47 : vector<4x64xf32>
    %49 = tpu.iota {dimensions = array<i32: 0>} : vector<4x64xi32>
    %50 = tpu.iota {dimensions = array<i32: 1>} : vector<4x64xi32>
    %c16_i32 = arith.constant 16 : i32
    %51 = vector.broadcast %c16_i32 : i32 to vector<4x64xi32>
    %52 = arith.muli %49, %51 : vector<4x64xi32>
    %53 = arith.cmpi sge, %50, %52 : vector<4x64xi32>
    %c16_i32_30 = arith.constant 16 : i32
    %54 = vector.broadcast %c16_i32_30 : i32 to vector<4x64xi32>
    %55 = arith.addi %52, %54 : vector<4x64xi32>
    %56 = arith.cmpi slt, %50, %55 : vector<4x64xi32>
    %57 = arith.andi %53, %56 : vector<4x64xi1>
    %cst_31 = arith.constant 0.000000e+00 : f32
    %58 = vector.broadcast %cst_31 : f32 to vector<4x64xf32>
    %59 = arith.select %57, %48, %58 : vector<4x64xi1>, vector<4x64xf32>
    %60 = arith.truncf %59 : vector<4x64xf32> to vector<4x64xbf16>
    %cst_32 = arith.constant dense<0.000000e+00> : vector<4x128xf32>
    %61 = tpu.matmul %60, %10, %cst_32 {dimension_numbers = #tpu.dot_dimension_numbers<[1], [0], [0], [1], [0, 0, 1, 1], [], []>} : vector<4x64xbf16>, vector<64x128xbf16>, vector<4x128xf32> -> vector<4x128xf32>
    %62 = arith.addf %61, %16 : vector<4x128xf32>
    %c0_33 = arith.constant 0 : index
    %c0_34 = arith.constant 0 : index
    %63 = vector.load %arg4[%c0_33, %c0_34] : memref<4x128xf32, #tpu.memory_space<vmem>>, vector<4x128xf32>
    tpu.vector_store %arg4[%c0_33, %c0_34], %62 {strides = array<i32>} : memref<4x128xf32, #tpu.memory_space<vmem>>, vector<4x128xf32>,
    return
  }
}

</mosaic_0001>

<llo_original>
// kernel: forward.1
$region0: #{forward.1}
  #allocation0 [shape = 'u32[]', space=smem, size = 0x4, offset = 0x4, fixed_abs, tag = 'smem constant byte address 0x4 - core index']
  #allocation1 [shape = 'u32[144,128]{1,0:T(1,128)}', space=vmem, size = 0x12000, scoped, tag = 'internal scratch']
  %s0 = inlined_call_operand.hbm [shape: f32[32,32], index: 0, kind: input, shape index: {}]
  %s1 = inlined_call_operand.vmem [shape: f32[32,16], index: 1, kind: input, shape index: {}]
  %s2 = inlined_call_operand.hbm [shape: bf16[208,128], index: 2, kind: input, shape index: {}]
  %s3 = inlined_call_operand.vmem [shape: f32[48,128], index: 3, kind: input, shape index: {}]
  %s4 = inlined_call_operand.vmem [shape: f32[4,128], index: 4, kind: output, shape index: {}]
  %s5 = sld [smem:[#allocation0]]
  $region34: #{forward.1} parent=0
    _
  %s7 = ssub.s32 1, %s5
  %s8 = scalar_select 0, %s7, %s5
  $region1: #{forward.1} parent=0
    #allocation2 [shape = 'u8[16384]{0}', space=vmem, size = 0x4000, scoped, tag = 'input window, operand 0, single buffered']
    #allocation3 [shape = 's32[1]{0}', space=sflag, size = 0x4, scoped, tag = 'scoped memory for forward.1']
    #allocation4 [shape = 'u8[53248]{0}', space=vmem, size = 0xd000, scoped, tag = 'input window, operand 2, single buffered']
    #allocation5 [shape = 's32[1]{0}', space=sflag, size = 0x4, scoped, tag = 'scoped memory for forward.1']
    %9 = vsyncpa [#allocation3], 0
    %10 = vsyncpa [#allocation5], 0
    // Predicated region
    $region2: #{forward.1} parent=1 // pred_check
      _
    $region3: #{forward.1} parent=1 // pred_check_branch
      %12 = sbr.rel (0) target = $region5
    $region4: #{forward.1} parent=1 // pred_region
      %s14 = ssub.s32 512, 512
      %15 = vsyncadd [#allocation3], %s14
      %s16 = sshll.u32 [#allocation2], 4
      %s17 = int_to_ptr.vmem [resolvable:$true] %s16
      %22 = dma.hbm_to_vmem [thread:$0]  %s0, 512, %s17, [#allocation3], 128, 128, 8
    $region5: #{forward.1} parent=1 // pred_fallthru
      _
    // Predicated region
    $region6: #{forward.1} parent=1 // pred_check
      _
    $region7: #{forward.1} parent=1 // pred_check_branch
      %24 = sbr.rel (0) target = $region9
    $region8: #{forward.1} parent=1 // pred_region
      _
    $region9: #{forward.1} parent=1 // pred_fallthru
      _
    // Predicated region
    $region10: #{forward.1} parent=1 // pred_check
      _
    $region11: #{forward.1} parent=1 // pred_check_branch
      %26 = sbr.rel (0) target = $region13
    $region12: #{forward.1} parent=1 // pred_region
      %s28 = ssub.s32 1664, 1664
      %29 = vsyncadd [#allocation5], %s28
      %s30 = sshll.u32 [#allocation4], 4
      %s31 = int_to_ptr.vmem [resolvable:$true] %s30
      %36 = dma.hbm_to_vmem [thread:$0]  %s2, 1664, %s31, [#allocation5], 64, 64, 4
    $region13: #{forward.1} parent=1 // pred_fallthru
      _
    // Predicated region
    $region14: #{forward.1} parent=1 // pred_check
      _
    $region15: #{forward.1} parent=1 // pred_check_branch
      %38 = sbr.rel (0) target = $region17
    $region16: #{forward.1} parent=1 // pred_region
      _
    $region17: #{forward.1} parent=1 // pred_fallthru
      _
    // Predicated region
    $region18: #{forward.1} parent=1 // pred_check
      _
    $region19: #{forward.1} parent=1 // pred_check_branch
      %40 = sbr.rel (0) target = $region21
    $region20: #{forward.1} parent=1 // pred_region
      %41 = dma.done [#allocation3], 512
    $region21: #{forward.1} parent=1 // pred_fallthru
      _
    // Predicated region
    $region22: #{forward.1} parent=1 // pred_check
      _
    $region23: #{forward.1} parent=1 // pred_check_branch
      %43 = sbr.rel (0) target = $region25
    $region24: #{forward.1} parent=1 // pred_region
      %44 = dma.done [#allocation5], 1664
    $region25: #{forward.1} parent=1 // pred_fallthru
      _
    %v46 = vld [vmem:[#allocation2] sm:$0xff]
    %v47 = vld [vmem:[#allocation2 + $0x8] sm:$0xff]
    %v48 = vld [vmem:[#allocation2 + $0x10] sm:$0xff]
    %v49 = vld [vmem:[#allocation2 + $0x18] sm:$0xff]
    %v50 = vpack.c.bf16 %v47, %v46
    %v51 = vpack.c.bf16 %v49, %v48
    %v52 = vld [vmem:[%s1] sm:$0xff]
    %v53 = vld [vmem:[%s1 + $0x8] sm:$0xff]
    %v54 = vld [vmem:[%s1 + $0x10] sm:$0xff]
    %v55 = vld [vmem:[%s1 + $0x18] sm:$0xff]
    %v56 = vpack.c.bf16 %v53, %v52
    %v57 = vpack.c.bf16 %v55, %v54
    %v58 = vld [vmem:[#allocation4] sm:$0xf]
    %v59 = vld [vmem:[#allocation4 + $0x4] sm:$0xf]
    %v60 = vld [vmem:[#allocation4 + $0x8] sm:$0xf]
    %v61 = vld [vmem:[#allocation4 + $0xc] sm:$0xf]
    %v62 = vld [vmem:[#allocation4 + $0x10] sm:$0xf]
    %v63 = vld [vmem:[#allocation4 + $0x14] sm:$0xf]
    %v64 = vld [vmem:[#allocation4 + $0x18] sm:$0xf]
    %v65 = vld [vmem:[#allocation4 + $0x1c] sm:$0xf]
    %v66 = vld [vmem:[#allocation4 + $0x20] sm:$0xf]
    %v67 = vld [vmem:[#allocation4 + $0x24] sm:$0xf]
    %v68 = vld [vmem:[#allocation4 + $0x28] sm:$0xf]
    %v69 = vld [vmem:[#allocation4 + $0x2c] sm:$0xf]
    %v70 = vld [vmem:[#allocation4 + $0x30] sm:$0x3]
    %v71 = vld [vmem:[#allocation4 + $0x38] sm:$0xf]
    %v72 = vld [vmem:[#allocation4 + $0x3c] sm:$0xf]
    %v73 = vld [vmem:[#allocation4 + $0x40] sm:$0xf]
    %v74 = vld [vmem:[#allocation4 + $0x44] sm:$0xf]
    %v75 = vld [vmem:[#allocation4 + $0x48] sm:$0xf]
    %v76 = vld [vmem:[#allocation4 + $0x4c] sm:$0xf]
    %v77 = vld [vmem:[#allocation4 + $0x50] sm:$0xf]
    %v78 = vld [vmem:[#allocation4 + $0x54] sm:$0xf]
    %v79 = vld [vmem:[#allocation4 + $0x58] sm:$0xf]
    %v80 = vld [vmem:[#allocation4 + $0x5c] sm:$0xf]
    %v81 = vld [vmem:[#allocation4 + $0x60] sm:$0xf]
    %v82 = vld [vmem:[#allocation4 + $0x64] sm:$0xf]
    %v83 = vld [vmem:[%s3] sm:$0x1]
    %v84 = vld [vmem:[%s3 + $0x8] sm:$0x1]
    %v85 = vld [vmem:[%s3 + $0x10] sm:$0x1]
    %v86 = vld [vmem:[%s3 + $0x18] sm:$0x1]
    %v87 = vld [vmem:[%s3 + $0x20] sm:$0xf]
    %v88 = vld [vmem:[%s3 + $0x28] sm:$0xf]
    %vm89 = vcmask 261120
    %v91 = vsel %vm89, %v50, 0
    %v94 = vsel %vm89, %v51, 0
    %96 = vmatprep.subr.bf16.mxu0 0
    %97 = vmatpush1.bf16.msra.mxu0 %v56
    %98 = vmatprep.subr.bf16.mxu0 0
    %99 = vmatpush1.bf16.msra.mxu0 %v57
    %100 = vmatprep.subr.bf16.mxu0 0
    %101 = vmatpush1.bf16.msra.mxu0 0
    %102 = vmatprep.subr.bf16.mxu0 0
    %103 = vmatpush1.bf16.msra.mxu0 0
    %104 = vmatprep.subr.bf16.mxu0 0
    %105 = vmatpush1.bf16.msra.mxu0 0
    %106 = vmatprep.subr.bf16.mxu0 0
    %107 = vmatpush1.bf16.msra.mxu0 0
    %108 = vmatprep.subr.bf16.mxu0 0
    %109 = vmatpush1.bf16.msra.mxu0 0
    %110 = vmatprep.subr.bf16.mxu0 0
    %111 = vmatpush1.bf16.msra.mxu0 0
    %112 = vmatprep.subr.bf16.mxu0 0
    %113 = vmatpush1.bf16.msra.mxu0 0
    %114 = vmatprep.subr.bf16.mxu0 0
    %115 = vmatpush1.bf16.msra.mxu0 0
    %116 = vmatprep.subr.bf16.mxu0 0
    %117 = vmatpush1.bf16.msra.mxu0 0
    %118 = vmatprep.subr.bf16.mxu0 0
    %119 = vmatpush1.bf16.msra.mxu0 0
    %120 = vmatprep.subr.bf16.mxu0 0
    %121 = vmatpush1.bf16.msra.mxu0 0
    %122 = vmatprep.subr.bf16.mxu0 0
    %123 = vmatpush1.bf16.msra.mxu0 0
    %124 = vmatprep.subr.bf16.mxu0 0
    %125 = vmatpush1.bf16.msra.mxu0 0
    %126 = vmatprep.subr.bf16.mxu0 0
    %127 = vmatpush1.bf16.msra.mxu0 0
    %128 = vmatprep.mubr.bf16.mxu0 0
    %129 = vmatmul.mubr.bf16.gmra.mrb[0].mxu0 %v91
    %v130 = vpop.f32.mrb[0].mxu0
    %v131 = vadd.f32 0.0, %v130
    %v132 = vpop.f32.mrb[0].mxu0
    %v133 = vpop.f32.mrb[0].mxu0
    %v134 = vadd.f32 0.0, %v133
    %v135 = vpop.f32.mrb[0].mxu0
    %136 = vmatprep.mubr.bf16.mxu0 0
    %137 = vmatmul.mubr.bf16.gmra.mrb[0].mxu0 %v94
    %v138 = vpop.f32.mrb[0].mxu0
    %v139 = vadd.f32 0.0, %v138
    %v140 = vpop.f32.mrb[0].mxu0
    %v141 = vpop.f32.mrb[0].mxu0
    %v142 = vadd.f32 0.0, %v141
    %v143 = vpop.f32.mrb[0].mxu0
    %144 = vdwg.mxu0
    %v145 = vpack.c.bf16 %v134, %v131
    %v146 = vpack.c.bf16 %v142, %v139
    %v147 = vlaneseq
    %v148 = vshrl.u32 %v147, 7
    %v149 = vsub.s32 0, %v148
    %v150 = vrot.slane %v83, %v149
    %v153 = vunpack.c.l.b16 %v58
    %v154 = vunpack.c.l.b16 %v59
    %v155 = vpack.c.b16 %v154, %v153
    %vm157 = vcmask 130048
    %v159 = vsel %vm157, %v145, 0
    %v162 = vsel %vm157, %v146, 0
    %164 = vmatprep.subr.bf16.mxu0 0
    %165 = vmatpush1.bf16.msra.mxu0 %v155
    %166 = vmatprep.subr.bf16.mxu0 0
    %167 = vmatpush1.bf16.msra.mxu0 0
    %168 = vmatprep.subr.bf16.mxu0 0
    %169 = vmatpush1.bf16.msra.mxu0 0
    %170 = vmatprep.subr.bf16.mxu0 0
    %171 = vmatpush1.bf16.msra.mxu0 0
    %172 = vmatprep.subr.bf16.mxu0 0
    %173 = vmatpush1.bf16.msra.mxu0 0
    %174 = vmatprep.subr.bf16.mxu0 0
    %175 = vmatpush1.bf16.msra.mxu0 0
    %176 = vmatprep.subr.bf16.mxu0 0
    %177 = vmatpush1.bf16.msra.mxu0 0
    %178 = vmatprep.subr.bf16.mxu0 0
    %179 = vmatpush1.bf16.msra.mxu0 0
    %180 = vmatprep.subr.bf16.mxu0 0
    %181 = vmatpush1.bf16.msra.mxu0 0
    %182 = vmatprep.subr.bf16.mxu0 0
    %183 = vmatpush1.bf16.msra.mxu0 0
    %184 = vmatprep.subr.bf16.mxu0 0
    %185 = vmatpush1.bf16.msra.mxu0 0
    %186 = vmatprep.subr.bf16.mxu0 0
    %187 = vmatpush1.bf16.msra.mxu0 0
    %188 = vmatprep.subr.bf16.mxu0 0
    %189 = vmatpush1.bf16.msra.mxu0 0
    %190 = vmatprep.subr.bf16.mxu0 0
    %191 = vmatpush1.bf16.msra.mxu0 0
    %192 = vmatprep.subr.bf16.mxu0 0
    %193 = vmatpush1.bf16.msra.mxu0 0
    %194 = vmatprep.subr.bf16.mxu0 0
    %195 = vmatpush1.bf16.msra.mxu0 0
    %196 = vmatprep.mubr.bf16.mxu0 0
    %197 = vmatmul.mubr.bf16.gmra.mrb[0].mxu0 %v159
    %v198 = vpop.f32.mrb[0].mxu0
    %v199 = vadd.f32 %v150, %v198
    %v200 = vpop.f32.mrb[0].mxu0
    %v201 = vpop.f32.mrb[0].mxu0
    %v202 = vadd.f32 %v150, %v201
    %v203 = vpop.f32.mrb[0].mxu0
    %204 = vmatprep.mubr.bf16.mxu0 0
    %205 = vmatmul.mubr.bf16.gmra.mrb[0].mxu0 %v162
    %v206 = vpop.f32.mrb[0].mxu0
    %v207 = vadd.f32 %v150, %v206
    %v208 = vpop.f32.mrb[0].mxu0
    %v209 = vpop.f32.mrb[0].mxu0
    %v210 = vadd.f32 %v150, %v209
    %v211 = vpop.f32.mrb[0].mxu0
    %212 = vdwg.mxu0
    %v213 = vmax.f32 %v199, 0.0
    %v214 = vmax.f32 %v202, 0.0
    %v215 = vmax.f32 %v207, 0.0
    %v216 = vmax.f32 %v210, 0.0
    %v217 = vpack.c.bf16 %v214, %v213
    %v218 = vpack.c.bf16 %v216, %v215
    %v223 = vunpack.c.l.b16 %v60
    %v224 = vunpack.c.l.b16 %v61
    %v225 = vunpack.c.l.b16 %v62
    %v226 = vunpack.c.l.b16 %v63
    %v227 = vpack.c.b16 %v224, %v223
    %v228 = vpack.c.b16 %v226, %v225
    %v232 = vsel %vm89, %v217, 0
    %v235 = vsel %vm89, %v218, 0
    %237 = vmatprep.subr.bf16.mxu0 0
    %238 = vmatpush1.bf16.msra.mxu0 %v227
    %239 = vmatprep.subr.bf16.mxu0 0
    %240 = vmatpush1.bf16.msra.mxu0 %v228
    %241 = vmatprep.subr.bf16.mxu0 0
    %242 = vmatpush1.bf16.msra.mxu0 0
    %243 = vmatprep.subr.bf16.mxu0 0
    %244 = vmatpush1.bf16.msra.mxu0 0
    %245 = vmatprep.subr.bf16.mxu0 0
    %246 = vmatpush1.bf16.msra.mxu0 0
    %247 = vmatprep.subr.bf16.mxu0 0
    %248 = vmatpush1.bf16.msra.mxu0 0
    %249 = vmatprep.subr.bf16.mxu0 0
    %250 = vmatpush1.bf16.msra.mxu0 0
    %251 = vmatprep.subr.bf16.mxu0 0
    %252 = vmatpush1.bf16.msra.mxu0 0
    %253 = vmatprep.subr.bf16.mxu0 0
    %254 = vmatpush1.bf16.msra.mxu0 0
    %255 = vmatprep.subr.bf16.mxu0 0
    %256 = vmatpush1.bf16.msra.mxu0 0
    %257 = vmatprep.subr.bf16.mxu0 0
    %258 = vmatpush1.bf16.msra.mxu0 0
    %259 = vmatprep.subr.bf16.mxu0 0
    %260 = vmatpush1.bf16.msra.mxu0 0
    %261 = vmatprep.subr.bf16.mxu0 0
    %262 = vmatpush1.bf16.msra.mxu0 0
    %263 = vmatprep.subr.bf16.mxu0 0
    %264 = vmatpush1.bf16.msra.mxu0 0
    %265 = vmatprep.subr.bf16.mxu0 0
    %266 = vmatpush1.bf16.msra.mxu0 0
    %267 = vmatprep.subr.bf16.mxu0 0
    %268 = vmatpush1.bf16.msra.mxu0 0
    %269 = vmatprep.mubr.bf16.mxu0 0
    %270 = vmatmul.mubr.bf16.gmra.mrb[0].mxu0 %v232
    %v271 = vpop.f32.mrb[0].mxu0
    %v272 = vadd.f32 0.0, %v271
    %v273 = vpop.f32.mrb[0].mxu0
    %v274 = vpop.f32.mrb[0].mxu0
    %v275 = vadd.f32 0.0, %v274
    %v276 = vpop.f32.mrb[0].mxu0
    %277 = vmatprep.mubr.bf16.mxu0 0
    %278 = vmatmul.mubr.bf16.gmra.mrb[0].mxu0 %v235
    %v279 = vpop.f32.mrb[0].mxu0
    %v280 = vadd.f32 0.0, %v279
    %v281 = vpop.f32.mrb[0].mxu0
    %v282 = vpop.f32.mrb[0].mxu0
    %v283 = vadd.f32 0.0, %v282
    %v284 = vpop.f32.mrb[0].mxu0
    %285 = vdwg.mxu0
    %v286 = vpack.c.bf16 %v275, %v272
    %v287 = vpack.c.bf16 %v283, %v280
    %v288 = vlaneseq
    %v289 = vshrl.u32 %v288, 7
    %v290 = vsub.s32 0, %v289
    %v291 = vrot.slane %v84, %v290
    %292 = vmatprep.subr.bf16.mxu0 0
    %293 = vmatpush1.bf16.msra.mxu0 %v286
    %294 = vmatprep.subr.bf16.mxu0 0
    %295 = vmatpush1.bf16.msra.mxu0 %v287
    %296 = vmatprep.subr.bf16.mxu0 0
    %297 = vmatpush1.bf16.msra.mxu0 0
    %298 = vmatprep.subr.bf16.mxu0 0
    %299 = vmatpush1.bf16.msra.mxu0 0
    %300 = vmatprep.subr.bf16.mxu0 0
    %301 = vmatpush1.bf16.msra.mxu0 0
    %302 = vmatprep.subr.bf16.mxu0 0
    %303 = vmatpush1.bf16.msra.mxu0 0
    %304 = vmatprep.subr.bf16.mxu0 0
    %305 = vmatpush1.bf16.msra.mxu0 0
    %306 = vmatprep.subr.bf16.mxu0 0
    %307 = vmatpush1.bf16.msra.mxu0 0
    %308 = vmatprep.subr.bf16.mxu0 0
    %309 = vmatpush1.bf16.msra.mxu0 0
    %310 = vmatprep.subr.bf16.mxu0 0
    %311 = vmatpush1.bf16.msra.mxu0 0
    %312 = vmatprep.subr.bf16.mxu0 0
    %313 = vmatpush1.bf16.msra.mxu0 0
    %314 = vmatprep.subr.bf16.mxu0 0
    %315 = vmatpush1.bf16.msra.mxu0 0
    %316 = vmatprep.subr.bf16.mxu0 0
    %317 = vmatpush1.bf16.msra.mxu0 0
    %318 = vmatprep.subr.bf16.mxu0 0
    %319 = vmatpush1.bf16.msra.mxu0 0
    %320 = vmatprep.subr.bf16.mxu0 0
    %321 = vmatpush1.bf16.msra.mxu0 0
    %322 = vmatprep.subr.bf16.mxu0 0
    %323 = vmatpush1.bf16.msra.mxu0 0
    %324 = vmatprep.mubr.bf16.mxu0 0
    %325 = vmatmul.mubr.bf16.gmra.mrb[0].mxu0 %v91
    %v326 = vpop.f32.mrb[0].mxu0
    %v327 = vadd.f32 %v291, %v326
    %v328 = vpop.f32.mrb[0].mxu0
    %v329 = vpop.f32.mrb[0].mxu0
    %v330 = vadd.f32 %v291, %v329
    %v331 = vpop.f32.mrb[0].mxu0
    %332 = vmatprep.mubr.bf16.mxu0 0
    %333 = vmatmul.mubr.bf16.gmra.mrb[0].mxu0 %v94
    %v334 = vpop.f32.mrb[0].mxu0
    %v335 = vadd.f32 %v291, %v334
    %v336 = vpop.f32.mrb[0].mxu0
    %v337 = vpop.f32.mrb[0].mxu0
    %v338 = vadd.f32 %v291, %v337
    %v339 = vpop.f32.mrb[0].mxu0
    %340 = vdwg.mxu0
    %v341 = vmax.f32 %v327, 0.0
    %v342 = vmax.f32 %v330, 0.0
    %v343 = vmax.f32 %v335, 0.0
    %v344 = vmax.f32 %v338, 0.0
    %v345 = vpack.c.bf16 %v342, %v341
    %v346 = vpack.c.bf16 %v344, %v343
    %v347 = vlaneseq
    %v348 = vshrl.u32 %v347, 7
    %v349 = vsub.s32 0, %v348
    %v350 = vrot.slane %v85, %v349
    %v355 = vunpack.c.l.b16 %v64
    %v356 = vunpack.c.l.b16 %v65
    %v357 = vunpack.c.l.b16 %v66
    %v358 = vunpack.c.l.b16 %v67
    %v359 = vpack.c.b16 %v356, %v355
    %v360 = vpack.c.b16 %v358, %v357
    %v364 = vsel %vm89, %v345, 0
    %v367 = vsel %vm89, %v346, 0
    %369 = vmatprep.subr.bf16.mxu0 0
    %370 = vmatpush1.bf16.msra.mxu0 %v359
    %371 = vmatprep.subr.bf16.mxu0 0
    %372 = vmatpush1.bf16.msra.mxu0 %v360
    %373 = vmatprep.subr.bf16.mxu0 0
    %374 = vmatpush1.bf16.msra.mxu0 0
    %375 = vmatprep.subr.bf16.mxu0 0
    %376 = vmatpush1.bf16.msra.mxu0 0
    %377 = vmatprep.subr.bf16.mxu0 0
    %378 = vmatpush1.bf16.msra.mxu0 0
    %379 = vmatprep.subr.bf16.mxu0 0
    %380 = vmatpush1.bf16.msra.mxu0 0
    %381 = vmatprep.subr.bf16.mxu0 0
    %382 = vmatpush1.bf16.msra.mxu0 0
    %383 = vmatprep.subr.bf16.mxu0 0
    %384 = vmatpush1.bf16.msra.mxu0 0
    %385 = vmatprep.subr.bf16.mxu0 0
    %386 = vmatpush1.bf16.msra.mxu0 0
    %387 = vmatprep.subr.bf16.mxu0 0
    %388 = vmatpush1.bf16.msra.mxu0 0
    %389 = vmatprep.subr.bf16.mxu0 0
    %390 = vmatpush1.bf16.msra.mxu0 0
    %391 = vmatprep.subr.bf16.mxu0 0
    %392 = vmatpush1.bf16.msra.mxu0 0
    %393 = vmatprep.subr.bf16.mxu0 0
    %394 = vmatpush1.bf16.msra.mxu0 0
    %395 = vmatprep.subr.bf16.mxu0 0
    %396 = vmatpush1.bf16.msra.mxu0 0
    %397 = vmatprep.subr.bf16.mxu0 0
    %398 = vmatpush1.bf16.msra.mxu0 0
    %399 = vmatprep.subr.bf16.mxu0 0
    %400 = vmatpush1.bf16.msra.mxu0 0
    %401 = vmatprep.mubr.bf16.mxu0 0
    %402 = vmatmul.mubr.bf16.gmra.mrb[0].mxu0 %v364
    %v403 = vpop.f32.mrb[0].mxu0
    %v404 = vadd.f32 %v350, %v403
    %v405 = vpop.f32.mrb[0].mxu0
    %v406 = vpop.f32.mrb[0].mxu0
    %v407 = vadd.f32 %v350, %v406
    %v408 = vpop.f32.mrb[0].mxu0
    %409 = vmatprep.mubr.bf16.mxu0 0
    %410 = vmatmul.mubr.bf16.gmra.mrb[0].mxu0 %v367
    %v411 = vpop.f32.mrb[0].mxu0
    %v412 = vadd.f32 %v350, %v411
    %v413 = vpop.f32.mrb[0].mxu0
    %v414 = vpop.f32.mrb[0].mxu0
    %v415 = vadd.f32 %v350, %v414
    %v416 = vpop.f32.mrb[0].mxu0
    %417 = vdwg.mxu0
    %v418 = vmax.f32 %v404, 0.0
    %v419 = vmax.f32 %v407, 0.0
    %v420 = vmax.f32 %v412, 0.0
    %v421 = vmax.f32 %v415, 0.0
    %v422 = vpack.c.bf16 %v419, %v418
    %v423 = vpack.c.bf16 %v421, %v420
    %v425 = vsel %vm89, %v70, 0
    %427 = vmatprep.subr.bf16.mxu0 0
    %428 = vmatpush1.bf16.msra.mxu0 %v422
    %429 = vmatprep.subr.bf16.mxu0 0
    %430 = vmatpush1.bf16.msra.mxu0 %v423
    %431 = vmatprep.subr.bf16.mxu0 0
    %432 = vmatpush1.bf16.msra.mxu0 0
    %433 = vmatprep.subr.bf16.mxu0 0
    %434 = vmatpush1.bf16.msra.mxu0 0
    %435 = vmatprep.subr.bf16.mxu0 0
    %436 = vmatpush1.bf16.msra.mxu0 0
    %437 = vmatprep.subr.bf16.mxu0 0
    %438 = vmatpush1.bf16.msra.mxu0 0
    %439 = vmatprep.subr.bf16.mxu0 0
    %440 = vmatpush1.bf16.msra.mxu0 0
    %441 = vmatprep.subr.bf16.mxu0 0
    %442 = vmatpush1.bf16.msra.mxu0 0
    %443 = vmatprep.subr.bf16.mxu0 0
    %444 = vmatpush1.bf16.msra.mxu0 0
    %445 = vmatprep.subr.bf16.mxu0 0
    %446 = vmatpush1.bf16.msra.mxu0 0
    %447 = vmatprep.subr.bf16.mxu0 0
    %448 = vmatpush1.bf16.msra.mxu0 0
    %449 = vmatprep.subr.bf16.mxu0 0
    %450 = vmatpush1.bf16.msra.mxu0 0
    %451 = vmatprep.subr.bf16.mxu0 0
    %452 = vmatpush1.bf16.msra.mxu0 0
    %453 = vmatprep.subr.bf16.mxu0 0
    %454 = vmatpush1.bf16.msra.mxu0 0
    %455 = vmatprep.subr.bf16.mxu0 0
    %456 = vmatpush1.bf16.msra.mxu0 0
    %457 = vmatprep.subr.bf16.mxu0 0
    %458 = vmatpush1.bf16.msra.mxu0 0
    %459 = vmatprep.mubr.bf16.mxu0 0
    %460 = vmatmul.mubr.bf16.gmra.mrb[0].mxu0 %v425
    %v461 = vpop.f32.mrb[0].mxu0
    %v462 = vadd.f32 0.0, %v461
    %v463 = vpop.f32.mrb[0].mxu0
    %v464 = vpop.f32.mrb[0].mxu0
    %v465 = vpop.f32.mrb[0].mxu0
    %466 = vdwg.mxu0
    %v467 = vpack.c.bf16 %v462, %v462
    %v470 = vunpack.c.l.b16 %v68
    %v471 = vunpack.c.l.b16 %v69
    %v472 = vpack.c.b16 %v471, %v470
    %v475 = vsel %vm157, %v467, 0
    %477 = vmatprep.subr.bf16.mxu0 0
    %478 = vmatpush1.bf16.msra.mxu0 %v472
    %479 = vmatprep.subr.bf16.mxu0 0
    %480 = vmatpush1.bf16.msra.mxu0 0
    %481 = vmatprep.subr.bf16.mxu0 0
    %482 = vmatpush1.bf16.msra.mxu0 0
    %483 = vmatprep.subr.bf16.mxu0 0
    %484 = vmatpush1.bf16.msra.mxu0 0
    %485 = vmatprep.subr.bf16.mxu0 0
    %486 = vmatpush1.bf16.msra.mxu0 0
    %487 = vmatprep.subr.bf16.mxu0 0
    %488 = vmatpush1.bf16.msra.mxu0 0
    %489 = vmatprep.subr.bf16.mxu0 0
    %490 = vmatpush1.bf16.msra.mxu0 0
    %491 = vmatprep.subr.bf16.mxu0 0
    %492 = vmatpush1.bf16.msra.mxu0 0
    %493 = vmatprep.subr.bf16.mxu0 0
    %494 = vmatpush1.bf16.msra.mxu0 0
    %495 = vmatprep.subr.bf16.mxu0 0
    %496 = vmatpush1.bf16.msra.mxu0 0
    %497 = vmatprep.subr.bf16.mxu0 0
    %498 = vmatpush1.bf16.msra.mxu0 0
    %499 = vmatprep.subr.bf16.mxu0 0
    %500 = vmatpush1.bf16.msra.mxu0 0
    %501 = vmatprep.subr.bf16.mxu0 0
    %502 = vmatpush1.bf16.msra.mxu0 0
    %503 = vmatprep.subr.bf16.mxu0 0
    %504 = vmatpush1.bf16.msra.mxu0 0
    %505 = vmatprep.subr.bf16.mxu0 0
    %506 = vmatpush1.bf16.msra.mxu0 0
    %507 = vmatprep.subr.bf16.mxu0 0
    %508 = vmatpush1.bf16.msra.mxu0 0
    %509 = vmatprep.mubr.bf16.mxu0 0
    %510 = vmatmul.mubr.bf16.gmra.mrb[0].mxu0 %v475
    %v511 = vpop.f32.mrb[0].mxu0
    %v512 = vadd.f32 %v87, %v511
    %v513 = vpop.f32.mrb[0].mxu0
    %v514 = vpop.f32.mrb[0].mxu0
    %v515 = vpop.f32.mrb[0].mxu0
    %516 = vdwg.mxu0
    %v517 = vpack.c.bf16 %v512, %v512
    %v518 = vlaneseq
    %v519 = vshrl.u32 %v518, 7
    %v520 = vsub.s32 0, %v519
    %v521 = vrot.slane %v86, %v520
    %v526 = vunpack.c.l.b16 %v71
    %v527 = vunpack.c.l.b16 %v72
    %v528 = vunpack.c.l.b16 %v73
    %v529 = vunpack.c.l.b16 %v74
    %v530 = vpack.c.b16 %v527, %v526
    %v531 = vpack.c.b16 %v529, %v528
    %v535 = vsel %vm89, %v517, 0
    %537 = vmatprep.subr.bf16.mxu0 0
    %538 = vmatpush1.bf16.msra.mxu0 %v530
    %539 = vmatprep.subr.bf16.mxu0 0
    %540 = vmatpush1.bf16.msra.mxu0 %v531
    %541 = vmatprep.subr.bf16.mxu0 0
    %542 = vmatpush1.bf16.msra.mxu0 0
    %543 = vmatprep.subr.bf16.mxu0 0
    %544 = vmatpush1.bf16.msra.mxu0 0
    %545 = vmatprep.subr.bf16.mxu0 0
    %546 = vmatpush1.bf16.msra.mxu0 0
    %547 = vmatprep.subr.bf16.mxu0 0
    %548 = vmatpush1.bf16.msra.mxu0 0
    %549 = vmatprep.subr.bf16.mxu0 0
    %550 = vmatpush1.bf16.msra.mxu0 0
    %551 = vmatprep.subr.bf16.mxu0 0
    %552 = vmatpush1.bf16.msra.mxu0 0
    %553 = vmatprep.subr.bf16.mxu0 0
    %554 = vmatpush1.bf16.msra.mxu0 0
    %555 = vmatprep.subr.bf16.mxu0 0
    %556 = vmatpush1.bf16.msra.mxu0 0
    %557 = vmatprep.subr.bf16.mxu0 0
    %558 = vmatpush1.bf16.msra.mxu0 0
    %559 = vmatprep.subr.bf16.mxu0 0
    %560 = vmatpush1.bf16.msra.mxu0 0
    %561 = vmatprep.subr.bf16.mxu0 0
    %562 = vmatpush1.bf16.msra.mxu0 0
    %563 = vmatprep.subr.bf16.mxu0 0
    %564 = vmatpush1.bf16.msra.mxu0 0
    %565 = vmatprep.subr.bf16.mxu0 0
    %566 = vmatpush1.bf16.msra.mxu0 0
    %567 = vmatprep.subr.bf16.mxu0 0
    %568 = vmatpush1.bf16.msra.mxu0 0
    %569 = vmatprep.mubr.bf16.mxu0 0
    %570 = vmatmul.mubr.bf16.gmra.mrb[0].mxu0 %v535
    %v571 = vpop.f32.mrb[0].mxu0
    %v572 = vadd.f32 %v521, %v571
    %v573 = vpop.f32.mrb[0].mxu0
    %v574 = vpop.f32.mrb[0].mxu0
    %v575 = vpop.f32.mrb[0].mxu0
    %576 = vdwg.mxu0
    %v577 = vmax.f32 %v572, 0.0
    %v578 = vlaneseq
    %v579 = vshrl.u32 %v578, 7
    %v580 = vlaneseq
    %v581 = vand.u32 %v580, 127
    %v582 = vmul.u32 %v579, 16
    %vm583 = vcmp.ge.s32.totalorder %v581, %v582
    %v584 = vadd.s32 %v582, 16
    %vm585 = vcmp.lt.s32.totalorder %v581, %v584
    %vm586 = vmand %vm583, %vm585
    %v587 = vsel %vm586, %v577, 0.0
    %v588 = vpack.c.bf16 %v587, %v587
    %v597 = vunpack.c.l.b16 %v75
    %v598 = vunpack.c.l.b16 %v76
    %v599 = vunpack.c.l.b16 %v77
    %v600 = vunpack.c.l.b16 %v78
    %v601 = vunpack.c.l.b16 %v79
    %v602 = vunpack.c.l.b16 %v80
    %v603 = vunpack.c.l.b16 %v81
    %v604 = vunpack.c.l.b16 %v82
    %v605 = vpack.c.b16 %v598, %v597
    %v606 = vpack.c.b16 %v600, %v599
    %v607 = vpack.c.b16 %v602, %v601
    %v608 = vpack.c.b16 %v604, %v603
    %vm613 = vcmask 523264
    %v615 = vsel %vm613, %v588, 0
    %617 = vmatprep.subr.bf16.mxu0 0
    %618 = vmatpush1.bf16.msra.mxu0 %v605
    %619 = vmatprep.subr.bf16.mxu0 0
    %620 = vmatpush1.bf16.msra.mxu0 %v606
    %621 = vmatprep.subr.bf16.mxu0 0
    %622 = vmatpush1.bf16.msra.mxu0 %v607
    %623 = vmatprep.subr.bf16.mxu0 0
    %624 = vmatpush1.bf16.msra.mxu0 %v608
    %625 = vmatprep.subr.bf16.mxu0 0
    %626 = vmatpush1.bf16.msra.mxu0 0
    %627 = vmatprep.subr.bf16.mxu0 0
    %628 = vmatpush1.bf16.msra.mxu0 0
    %629 = vmatprep.subr.bf16.mxu0 0
    %630 = vmatpush1.bf16.msra.mxu0 0
    %631 = vmatprep.subr.bf16.mxu0 0
    %632 = vmatpush1.bf16.msra.mxu0 0
    %633 = vmatprep.subr.bf16.mxu0 0
    %634 = vmatpush1.bf16.msra.mxu0 0
    %635 = vmatprep.subr.bf16.mxu0 0
    %636 = vmatpush1.bf16.msra.mxu0 0
    %637 = vmatprep.subr.bf16.mxu0 0
    %638 = vmatpush1.bf16.msra.mxu0 0
    %639 = vmatprep.subr.bf16.mxu0 0
    %640 = vmatpush1.bf16.msra.mxu0 0
    %641 = vmatprep.subr.bf16.mxu0 0
    %642 = vmatpush1.bf16.msra.mxu0 0
    %643 = vmatprep.subr.bf16.mxu0 0
    %644 = vmatpush1.bf16.msra.mxu0 0
    %645 = vmatprep.subr.bf16.mxu0 0
    %646 = vmatpush1.bf16.msra.mxu0 0
    %647 = vmatprep.subr.bf16.mxu0 0
    %648 = vmatpush1.bf16.msra.mxu0 0
    %649 = vmatprep.mubr.bf16.mxu0 0
    %650 = vmatmul.mubr.bf16.gmra.mrb[0].mxu0 %v615
    %v651 = vpop.f32.mrb[0].mxu0
    %v652 = vadd.f32 %v88, %v651
    %v653 = vpop.f32.mrb[0].mxu0
    %v654 = vpop.f32.mrb[0].mxu0
    %v655 = vpop.f32.mrb[0].mxu0
    %656 = vdwg.mxu0
    %657 = vst [vmem:[%s4] sm:$0xf] %v652
    // Predicated region
    $region26: #{forward.1} parent=1 // pred_check
      _
    $region27: #{forward.1} parent=1 // pred_check_branch
      %659 = sbr.rel (0) target = $region29
    $region28: #{forward.1} parent=1 // pred_region
      _
    $region29: #{forward.1} parent=1 // pred_fallthru
      _
    // Predicated region
    $region30: #{forward.1} parent=1 // pred_check
      _
    $region31: #{forward.1} parent=1 // pred_check_branch
      %661 = sbr.rel (0) target = $region33
    $region32: #{forward.1} parent=1 // pred_region
      _
    $region33: #{forward.1} parent=1 // pred_fallthru
      _
    %662 = vsyncpa [#allocation3], 1
    %663 = vsyncpa [#allocation5], 1

</llo_original>
